<compile_context>
chip_gen: v5e
topology: v5e:2x2
jax: 0.10.0
libtpu: 0.0.40
codegen_flags: <defaults>
</compile_context>

<pallas_src>
import jax
import jax.numpy as jnp
from jax.experimental import pallas as pl
from jax.experimental.pallas import tpu as pltpu

LANE = 128
_VMEM_BUDGET = 24 << 20   # double-buffered working-set budget, safe on all gens


def mure_kernel(u_ref, v_ref, ru_ref, rv_ref, bias_ref, out_ref):
    # u/v/ru/rv blocks: (D, TB)  -- embedding dim on sublanes, batch on lanes.
    # bias/out blocks:  (1, TB)  -- lane-dense (bias = bs[u_idx] + bo[v_idx]).
    u = u_ref[...].astype(jnp.float32)
    v = v_ref[...].astype(jnp.float32)
    ru = ru_ref[...].astype(jnp.float32)
    rv = rv_ref[...].astype(jnp.float32)
    diff = u * ru - (v + rv)                                    # pure VALU
    sqdist = jnp.sum(diff * diff, axis=0, keepdims=True)        # sublane reduce
    out_ref[...] = bias_ref[...] - sqdist


def _cdiv(a, b):
    return (a + b - 1) // b


def _round_up(x, m):
    return _cdiv(x, m) * m


def mure_forward(Eh, rv_w, Wu, bs, bo, u_idx, r_idx, v_idx, *,
                 max_tile=8192, staging_dtype=jnp.float32):
    """Batched MuRE scores, shape (B,)."""
    B = u_idx.shape[0]
    D = Eh.shape[1]
    itemsize = jnp.dtype(staging_dtype).itemsize

    # ---- Embedding gathers + single bias row (XLA glue; see TODO above). ----
    u = jnp.take(Eh, u_idx, axis=0).T.astype(staging_dtype)       # (D, B)
    v = jnp.take(Eh, v_idx, axis=0).T.astype(staging_dtype)       # (D, B)
    ru = jnp.take(Wu, r_idx, axis=0).T.astype(staging_dtype)      # (D, B)
    rv = jnp.take(rv_w, r_idx, axis=0).T.astype(staging_dtype)    # (D, B)
    bias = (jnp.take(bs, u_idx) + jnp.take(bo, v_idx))[None, :]   # (1, B), f32

    # ---- Tile sizing ----
    # Per-example bytes per pipeline buffer: 4 vec streams + bias-in + out rows.
    bytes_per_ex = 4 * D * itemsize + 2 * 4
    tb_vmem_cap = max(LANE, (_VMEM_BUDGET // (2 * bytes_per_ex)) // LANE * LANE)
    max_tile_eff = max(LANE, min(max_tile, tb_vmem_cap))

    B_lane = _round_up(B, LANE)                 # bounded padding (<=127 lanes)
    num_tiles = _cdiv(B_lane, max_tile_eff)
    # Keep >=2 (ideally 4) grid steps when there is enough work: v7x megacore
    # shards the "parallel" axis across its two TensorCores and the pipeline
    # needs multiple steps for DMA/compute overlap.
    num_tiles = max(num_tiles, min(4, B_lane // 2048), 1)
    TB = _round_up(_cdiv(B_lane, num_tiles), LANE)
    num_tiles = _cdiv(B_lane, TB)
    B_pad = num_tiles * TB                      # waste bounded by num_tiles*128

    pad = B_pad - B
    if pad:
        u = jnp.pad(u, ((0, 0), (0, pad)))
        v = jnp.pad(v, ((0, 0), (0, pad)))
        ru = jnp.pad(ru, ((0, 0), (0, pad)))
        rv = jnp.pad(rv, ((0, 0), (0, pad)))
        bias = jnp.pad(bias, ((0, 0), (0, pad)))

    # Double-buffered working set; v5e default scoped VMEM is only 16 MiB, so
    # request what we actually need (with headroom), capped well under the
    # smallest physical VMEM (v7x: 64 MiB).
    vmem_need = 2 * bytes_per_ex * TB
    vmem_limit = int(min(max(vmem_need + (4 << 20), 16 << 20), 40 << 20))

    vec_spec = pl.BlockSpec((D, TB), lambda i: (0, i))
    row_spec = pl.BlockSpec((1, TB), lambda i: (0, i))

    cost = pl.CostEstimate(
        flops=int(5 * D * B_pad),
        transcendentals=0,
        bytes_accessed=int(B_pad * (4 * D * itemsize + 8)),
    )

    out = pl.pallas_call(
        mure_kernel,
        out_shape=jax.ShapeDtypeStruct((1, B_pad), jnp.float32),
        grid=(num_tiles,),
        in_specs=[vec_spec, vec_spec, vec_spec, vec_spec, row_spec],
        out_specs=row_spec,
        compiler_params=pltpu.CompilerParams(
            dimension_semantics=("parallel",),   # megacore sharding on v7x
            vmem_limit_bytes=vmem_limit,
        ),
        cost_estimate=cost,
    )(u, v, ru, rv, bias)

    return out[0, :B]


if __name__ == "__main__":
    key = jax.random.PRNGKey(0)
    n_entities, n_relations, dim = 10, 5, 32

    k1, k2, k3 = jax.random.split(key, 3)
    # TODO(synk): the PyTorch module is float64; approximated with float32 on TPU.
    Eh = 0.001 * jax.random.normal(k1, (n_entities, dim), dtype=jnp.float32)
    rv_w = 0.001 * jax.random.normal(k2, (n_relations, dim), dtype=jnp.float32)
    Wu = jax.random.uniform(k3, (n_relations, dim), minval=-1.0, maxval=1.0,
                            dtype=jnp.float32)
    bs = jnp.zeros((n_entities,), dtype=jnp.float32)
    bo = jnp.zeros((n_entities,), dtype=jnp.float32)

    fwd = jax.jit(mure_forward)

    def ref_scores(u_idx, r_idx, v_idx):
        u_r = Eh[u_idx]; v_r = Eh[v_idx]
        Ru_r = Wu[r_idx]; rv_r = rv_w[r_idx]
        return (-jnp.sum((u_r * Ru_r - (v_r + rv_r)) ** 2, axis=-1)
                + bs[u_idx] + bo[v_idx])

    ok = True
    # batch=8: small single-tile path; batch=4133: padded multi-tile grid path.
    for i, batch in enumerate((8, 4133)):
        ku, kr, kv = jax.random.split(jax.random.PRNGKey(i + 1), 3)
        u_idx = jax.random.randint(ku, (batch,), 0, n_entities)
        r_idx = jax.random.randint(kr, (batch,), 0, n_relations)
        v_idx = jax.random.randint(kv, (batch,), 0, n_entities)

        scores = fwd(Eh, rv_w, Wu, bs, bo, u_idx, r_idx, v_idx)
        jax.block_until_ready(scores)

        ok &= scores.shape == (batch,)
        ok &= bool(jnp.allclose(scores, ref_scores(u_idx, r_idx, v_idx),
                                atol=1e-5, rtol=1e-5))

    assert ok
    print("KERNEL_OK")
</pallas_src>

<mosaic_0001>
module attributes {stable_mosaic.version = 11 : i64} {
  func.func @mure_kernel(%arg0: i32, %arg1: memref<32x128xf32, #tpu.memory_space<vmem>>, %arg2: memref<32x128xf32, #tpu.memory_space<vmem>>, %arg3: memref<32x128xf32, #tpu.memory_space<vmem>>, %arg4: memref<32x128xf32, #tpu.memory_space<vmem>>, %arg5: memref<1x128xf32, #tpu.memory_space<vmem>>, %arg6: memref<1x128xf32, #tpu.memory_space<vmem>>) attributes {dimension_semantics = [#tpu.dimension_semantics<parallel>], iteration_bounds = array<i64: 1>, scalar_prefetch = 0 : i64, scratch_operands = 0 : i64, tpu.core_type = #tpu.core_type<tc>, window_params = [{transform_indices = @transform_0, window_bounds = array<i64: 32, 128>}, {transform_indices = @transform_1, window_bounds = array<i64: 32, 128>}, {transform_indices = @transform_2, window_bounds = array<i64: 32, 128>}, {transform_indices = @transform_3, window_bounds = array<i64: 32, 128>}, {transform_indices = @transform_4, window_bounds = array<i64: 1, 128>}, {transform_indices = @transform_5, window_bounds = array<i64: 1, 128>}]} {
    %c0 = arith.constant 0 : index
    %c0_0 = arith.constant 0 : index
    %0 = vector.load %arg1[%c0, %c0_0] : memref<32x128xf32, #tpu.memory_space<vmem>>, vector<32x128xf32>
    %c0_1 = arith.constant 0 : index
    %c0_2 = arith.constant 0 : index
    %1 = vector.load %arg2[%c0_1, %c0_2] : memref<32x128xf32, #tpu.memory_space<vmem>>, vector<32x128xf32>
    %c0_3 = arith.constant 0 : index
    %c0_4 = arith.constant 0 : index
    %2 = vector.load %arg3[%c0_3, %c0_4] : memref<32x128xf32, #tpu.memory_space<vmem>>, vector<32x128xf32>
    %c0_5 = arith.constant 0 : index
    %c0_6 = arith.constant 0 : index
    %3 = vector.load %arg4[%c0_5, %c0_6] : memref<32x128xf32, #tpu.memory_space<vmem>>, vector<32x128xf32>
    %4 = arith.mulf %0, %2 : vector<32x128xf32>
    %5 = arith.addf %1, %3 : vector<32x128xf32>
    %6 = arith.subf %4, %5 : vector<32x128xf32>
    %7 = arith.mulf %6, %6 : vector<32x128xf32>
    %cst = arith.constant dense<0.000000e+00> : vector<128xf32>
    %8 = vector.multi_reduction <add>, %7, %cst [0] : vector<32x128xf32> to vector<128xf32>
    %9 = vector.shape_cast %8 : vector<128xf32> to vector<1x128xf32>
    %c0_7 = arith.constant 0 : index
    %c0_8 = arith.constant 0 : index
    %10 = vector.load %arg5[%c0_7, %c0_8] : memref<1x128xf32, #tpu.memory_space<vmem>>, vector<1x128xf32>
    %11 = arith.subf %10, %9 : vector<1x128xf32>
    %c0_9 = arith.constant 0 : index
    %c0_10 = arith.constant 0 : index
    %12 = vector.load %arg6[%c0_9, %c0_10] : memref<1x128xf32, #tpu.memory_space<vmem>>, vector<1x128xf32>
    tpu.vector_store %arg6[%c0_9, %c0_10], %11 {strides = array<i32>} : memref<1x128xf32, #tpu.memory_space<vmem>>, vector<1x128xf32>,
    return
  }
  func.func @transform_0(%arg0: i32) -> (i32, i32) {
    %c0_i32 = arith.constant 0 : i32
    %c0_i32_0 = arith.constant 0 : i32
    return %c0_i32, %arg0 : i32, i32
  }
  func.func @transform_1(%arg0: i32) -> (i32, i32) {
    %c0_i32 = arith.constant 0 : i32
    %c0_i32_0 = arith.constant 0 : i32
    return %c0_i32, %arg0 : i32, i32
  }
  func.func @transform_2(%arg0: i32) -> (i32, i32) {
    %c0_i32 = arith.constant 0 : i32
    %c0_i32_0 = arith.constant 0 : i32
    return %c0_i32, %arg0 : i32, i32
  }
  func.func @transform_3(%arg0: i32) -> (i32, i32) {
    %c0_i32 = arith.constant 0 : i32
    %c0_i32_0 = arith.constant 0 : i32
    return %c0_i32, %arg0 : i32, i32
  }
  func.func @transform_4(%arg0: i32) -> (i32, i32) {
    %c0_i32 = arith.constant 0 : i32
    %c0_i32_0 = arith.constant 0 : i32
    return %c0_i32, %arg0 : i32, i32
  }
  func.func @transform_5(%arg0: i32) -> (i32, i32) {
    %c0_i32 = arith.constant 0 : i32
    %c0_i32_0 = arith.constant 0 : i32
    return %c0_i32, %arg0 : i32, i32
  }
}

</mosaic_0001>

<llo_original>
// kernel: mure_forward.1
$region0: #{mure_forward.1}
  #allocation0 [shape = 'u32[]', space=smem, size = 0x4, offset = 0x4, fixed_abs, tag = 'smem constant byte address 0x4 - core index']
  #allocation1 [shape = 'u32[72,128]{1,0:T(1,128)}', space=vmem, size = 0x9000, scoped, tag = 'internal scratch']
  %s0 = inlined_call_operand.vmem [shape: f32[32,128], index: 0, kind: input, shape index: {}]
  %s1 = inlined_call_operand.vmem [shape: f32[32,128], index: 1, kind: input, shape index: {}]
  %s2 = inlined_call_operand.vmem [shape: f32[32,128], index: 2, kind: input, shape index: {}]
  %s3 = inlined_call_operand.vmem [shape: f32[32,128], index: 3, kind: input, shape index: {}]
  %s4 = inlined_call_operand.vmem [shape: f32[1,128], index: 4, kind: input, shape index: {}]
  %s5 = inlined_call_operand.vmem [shape: f32[1,128], index: 5, kind: output, shape index: {}]
  %s6 = sld [smem:[#allocation0]]
  $region30: #{mure_forward.1} parent=0
    _
  %s8 = ssub.s32 1, %s6
  %s9 = scalar_select 0, %s8, %s6
  // Predicated region
  $region2: #{mure_forward.1} parent=0 // pred_check
    _
  $region3: #{mure_forward.1} parent=0 // pred_check_branch
    %11 = sbr.rel (0) target = $region5
  $region4: #{mure_forward.1} parent=0 // pred_region
    _
  $region5: #{mure_forward.1} parent=0 // pred_fallthru
    _
  // Predicated region
  $region6: #{mure_forward.1} parent=0 // pred_check
    _
  $region7: #{mure_forward.1} parent=0 // pred_check_branch
    %13 = sbr.rel (0) target = $region9
  $region8: #{mure_forward.1} parent=0 // pred_region
    _
  $region9: #{mure_forward.1} parent=0 // pred_fallthru
    _
  // Predicated region
  $region10: #{mure_forward.1} parent=0 // pred_check
    _
  $region11: #{mure_forward.1} parent=0 // pred_check_branch
    %15 = sbr.rel (0) target = $region13
  $region12: #{mure_forward.1} parent=0 // pred_region
    _
  $region13: #{mure_forward.1} parent=0 // pred_fallthru
    _
  // Predicated region
  $region14: #{mure_forward.1} parent=0 // pred_check
    _
  $region15: #{mure_forward.1} parent=0 // pred_check_branch
    %17 = sbr.rel (0) target = $region17
  $region16: #{mure_forward.1} parent=0 // pred_region
    _
  $region17: #{mure_forward.1} parent=0 // pred_fallthru
    _
  // Predicated region
  $region18: #{mure_forward.1} parent=0 // pred_check
    _
  $region19: #{mure_forward.1} parent=0 // pred_check_branch
    %19 = sbr.rel (0) target = $region21
  $region20: #{mure_forward.1} parent=0 // pred_region
    _
  $region21: #{mure_forward.1} parent=0 // pred_fallthru
    _
  %v20 = vld [vmem:[%s0] sm:$0xff]
  %v21 = vld [vmem:[%s0 + $0x8] sm:$0xff]
  %v22 = vld [vmem:[%s0 + $0x10] sm:$0xff]
  %v23 = vld [vmem:[%s0 + $0x18] sm:$0xff]
  %v24 = vld [vmem:[%s1] sm:$0xff]
  %v25 = vld [vmem:[%s1 + $0x8] sm:$0xff]
  %v26 = vld [vmem:[%s1 + $0x10] sm:$0xff]
  %v27 = vld [vmem:[%s1 + $0x18] sm:$0xff]
  %v28 = vld [vmem:[%s2] sm:$0xff]
  %v29 = vld [vmem:[%s2 + $0x8] sm:$0xff]
  %v30 = vld [vmem:[%s2 + $0x10] sm:$0xff]
  %v31 = vld [vmem:[%s2 + $0x18] sm:$0xff]
  %v32 = vld [vmem:[%s3] sm:$0xff]
  %v33 = vld [vmem:[%s3 + $0x8] sm:$0xff]
  %v34 = vld [vmem:[%s3 + $0x10] sm:$0xff]
  %v35 = vld [vmem:[%s3 + $0x18] sm:$0xff]
  %v36 = vmul.f32 %v20, %v28
  %v37 = vmul.f32 %v21, %v29
  %v38 = vmul.f32 %v22, %v30
  %v39 = vmul.f32 %v23, %v31
  %v40 = vadd.f32 %v24, %v32
  %v41 = vadd.f32 %v25, %v33
  %v42 = vadd.f32 %v26, %v34
  %v43 = vadd.f32 %v27, %v35
  %v44 = vsub.f32 %v36, %v40
  %v45 = vsub.f32 %v37, %v41
  %v46 = vsub.f32 %v38, %v42
  %v47 = vsub.f32 %v39, %v43
  %v48 = vmul.f32 %v44, %v44
  %v49 = vmul.f32 %v45, %v45
  %v50 = vmul.f32 %v46, %v46
  %v51 = vmul.f32 %v47, %v47
  %v52 = vadd.f32 %v48, %v49
  %v53 = vadd.f32 %v52, %v50
  %v54 = vadd.f32 %v53, %v51
  %v55 = vrot.slane %v54, 4
  %v56 = vadd.f32 %v54, %v55
  %v57 = vrot.slane %v56, 2
  %v58 = vadd.f32 %v56, %v57
  %v59 = vrot.slane %v58, 1
  %v60 = vadd.f32 %v58, %v59
  %v61 = vld [vmem:[%s4] sm:$0x1]
  %v62 = vsub.f32 %v61, %v60
  %63 = vst [vmem:[%s5] sm:$0x1] %v62
  // Predicated region
  $region22: #{mure_forward.1} parent=0 // pred_check
    _
  $region23: #{mure_forward.1} parent=0 // pred_check_branch
    %65 = sbr.rel (0) target = $region25
  $region24: #{mure_forward.1} parent=0 // pred_region
    _
  $region25: #{mure_forward.1} parent=0 // pred_fallthru
    _
  // Predicated region
  $region26: #{mure_forward.1} parent=0 // pred_check
    _
  $region27: #{mure_forward.1} parent=0 // pred_check_branch
    %67 = sbr.rel (0) target = $region29
  $region28: #{mure_forward.1} parent=0 // pred_region
    _
  $region29: #{mure_forward.1} parent=0 // pred_fallthru
    _

</llo_original>
